<compile_context>
chip_gen: v5e
topology: v5e:2x2
jax: 0.10.0
libtpu: 0.0.40
codegen_flags: <defaults>
</compile_context>

<pallas_src>
import numpy as np
import jax
import jax.numpy as jnp
from jax.experimental import pallas as pl
from jax.experimental.pallas import tpu as pltpu

# ---------------------------------------------------------------------------
# Hyper-parameters (mirror TextClassifierRNN.__init__)
# ---------------------------------------------------------------------------
VOCAB_SIZE = 50
EMBED_DIM = 32
HIDDEN_DIM = 32
OUTPUT_DIM = 1
N_LAYERS = 2

BATCH = 8
SEQ_LEN = 10

VOCAB_PAD = 64            # one-hot lane width (>= VOCAB_SIZE)
OUT_PAD = 128             # lane-dense output store; real logit is column 0.
MM_DTYPE = jnp.bfloat16   # MXU operand dtype; accumulate + elementwise stay f32.


# ---------------------------------------------------------------------------
# Kernel
# ---------------------------------------------------------------------------
def make_rnn_kernel(n_layers, seq_len, batch_block, hidden, vocab_pad):
    """Fused stacked tanh-RNN (incl. embedding lookup) + last-step select +
    FC + sigmoid in one kernel.  Layer-0 input projection is hoisted into a
    single pre-loop matmul; the fully-unrolled recurrence carries state in
    vregs only."""

    def kernel(last_idx_ref, ids_ref, mask_ref, *rest):
        # ---- unpack refs ----------------------------------------------------
        # last_idx_ref : SMEM (1,) int32     scalar-prefetch, = max(lengths) - 1
        # ids_ref      : VMEM (1, T*Bb, 1) int32  token ids, row = t*Bb + b
        # mask_ref     : VMEM (Bb, 1) f32    1.0 iff length == max(lengths)
        emb_proj_ref = rest[0]                 # (VOCAB_PAD, H) bf16, b_0 folded in
        w_hh = [rest[1]]                       # layer-0 recurrent weight, bf16
        w_ih = [None]
        b_l = [None]
        pos = 2
        for _ in range(1, n_layers):
            w_ih.append(rest[pos]); w_hh.append(rest[pos + 1]); b_l.append(rest[pos + 2])
            pos += 3
        fc_w_ref = rest[pos]                   # (H, OUT_PAD) bf16
        fc_b_ref = rest[pos + 1]               # (1, OUT_PAD) f32
        out_ref = rest[pos + 2]                # (Bb, OUT_PAD) f32 output

        li = last_idx_ref[0]

        # ---- hoisted prologue: all-timestep layer-0 input projection --------
        tb = seq_len * batch_block
        ids = ids_ref[0]                                            # (T*Bb, 1)
        lane_iota = jax.lax.broadcasted_iota(jnp.int32, (tb, vocab_pad), 1)
        onehot = (ids == lane_iota).astype(MM_DTYPE)                # (T*Bb, V_PAD)
        # One MXU matmul for every token of every timestep; bias b_0 is already
        # folded into emb_proj (each one-hot row sums to 1, so the fold is exact
        # up to bf16 rounding of the parameters).
        xproj = jnp.dot(onehot, emb_proj_ref[...],
                        preferred_element_type=jnp.float32)         # (T*Bb, H) f32

        # ---- weights / biases hoisted out of the time loop ------------------
        w_hh_v = [w_hh[l][...] for l in range(n_layers)]
        w_ih_v = [None] + [w_ih[l][...] for l in range(1, n_layers)]
        bias_v = [None] + [jnp.broadcast_to(b_l[l][...], (batch_block, hidden))
                           for l in range(1, n_layers)]

        hs = [jnp.zeros((batch_block, hidden), jnp.float32) for _ in range(n_layers)]
        h_sel = jnp.zeros((batch_block, hidden), jnp.float32)

        # ---- fully-unrolled recurrence (T small; demo sequences reach T) -----
        # For much longer T or typically-short batches, switch this to
        # lax.fori_loop(0, li + 1, body, hs) and drop the per-step select.
        for t in range(seq_len):
            x_in = xproj[t * batch_block:(t + 1) * batch_block]      # (Bb, H) f32
            new_hs = []
            for l in range(n_layers):
                # h-side dot depends only on the previous step -> schedules early.
                h_side = jnp.dot(hs[l].astype(MM_DTYPE), w_hh_v[l],
                                 preferred_element_type=jnp.float32)
                if l == 0:
                    z = x_in + h_side                # bias already inside xproj
                else:
                    z = (jnp.dot(x_in.astype(MM_DTYPE), w_ih_v[l],
                                 preferred_element_type=jnp.float32)
                         + bias_v[l]) + h_side
                h_new = jnp.tanh(z)                                  # f32, EUP
                new_hs.append(h_new)
                x_in = h_new                                         # feed next layer
            hs = new_hs
            # pad_packed + output[:, -1, :]: capture top hidden at t == li.
            h_sel = jnp.where(jnp.equal(t, li), hs[-1], h_sel)

        # ---- epilogue: mask short rows, FC (bf16 MXU), sigmoid, lane-dense ---
        h_last = h_sel * mask_ref[...]                               # (Bb, H)
        logits = jnp.dot(h_last.astype(MM_DTYPE), fc_w_ref[...],
                         preferred_element_type=jnp.float32) + fc_b_ref[...]
        out_ref[...] = jax.nn.sigmoid(logits)

    return kernel


# ---------------------------------------------------------------------------
# Parameters
# ---------------------------------------------------------------------------
def init_params(key):
    """Deterministic synthetic parameters (shapes follow nn.RNN / nn.Linear)."""
    ks = jax.random.split(key, 3 + 4 * N_LAYERS)
    params = {}
    params["embedding"] = jax.random.normal(
        ks[0], (VOCAB_SIZE, EMBED_DIM), jnp.float32)       # pretrained_embedding
    bound = 1.0 / np.sqrt(HIDDEN_DIM)
    idx = 1
    for l in range(N_LAYERS):
        in_dim = EMBED_DIM if l == 0 else HIDDEN_DIM
        # stored transposed: (in_dim, H), (H, H) so the kernel computes x @ W
        params[f"w_ih_{l}"] = jax.random.uniform(
            ks[idx], (in_dim, HIDDEN_DIM), jnp.float32, -bound, bound); idx += 1
        params[f"w_hh_{l}"] = jax.random.uniform(
            ks[idx], (HIDDEN_DIM, HIDDEN_DIM), jnp.float32, -bound, bound); idx += 1
        b_ih = jax.random.uniform(
            ks[idx], (HIDDEN_DIM,), jnp.float32, -bound, bound); idx += 1
        b_hh = jax.random.uniform(
            ks[idx], (HIDDEN_DIM,), jnp.float32, -bound, bound); idx += 1
        params[f"b_{l}"] = (b_ih + b_hh).reshape(1, HIDDEN_DIM)
    params["fc_w"] = jax.random.uniform(
        ks[idx], (HIDDEN_DIM, OUTPUT_DIM), jnp.float32, -bound, bound); idx += 1
    params["fc_b"] = jax.random.uniform(
        ks[idx], (1, OUTPUT_DIM), jnp.float32, -bound, bound)
    return params


def prepare_kernel_params(params):
    """Pre-fold weights for the kernel (done once, outside the hot path)."""
    kp = {"w_ih": [None], "w_hh": [], "b": [None]}
    # layer 0: fold the embedding table into the input-side weight AND fold the
    # layer-0 bias into every (real) vocab row; pad vocab rows with zeros.
    emb_proj = params["embedding"] @ params["w_ih_0"] + params["b_0"]     # (V, H) f32
    emb_proj = jnp.pad(emb_proj, ((0, VOCAB_PAD - VOCAB_SIZE), (0, 0)))   # (V_PAD, H)
    kp["emb_proj"] = emb_proj.astype(MM_DTYPE)
    kp["w_hh"].append(params["w_hh_0"].astype(MM_DTYPE))
    for l in range(1, N_LAYERS):
        kp["w_ih"].append(params[f"w_ih_{l}"].astype(MM_DTYPE))
        kp["w_hh"].append(params[f"w_hh_{l}"].astype(MM_DTYPE))
        kp["b"].append(params[f"b_{l}"].astype(jnp.float32))
    fc_w = jnp.zeros((HIDDEN_DIM, OUT_PAD), jnp.float32)
    fc_w = fc_w.at[:, :OUTPUT_DIM].set(params["fc_w"])
    kp["fc_w"] = fc_w.astype(MM_DTYPE)                     # bf16 MXU epilogue
    fc_b = jnp.zeros((1, OUT_PAD), jnp.float32)
    kp["fc_b"] = fc_b.at[:, :OUTPUT_DIM].set(params["fc_b"])
    return kp


# ---------------------------------------------------------------------------
# Forward wrapper
# ---------------------------------------------------------------------------
def forward(x, lengths, kparams, *, batch_block=None):
    B, T = x.shape
    if batch_block is None:
        if B >= 16:
            # >= 2 grid blocks so both v7x TensorCores get work; MXU M fills up
            # to 256 per block on v6e/v7x.
            batch_block = min(256, B // 2)
        else:
            batch_block = B
    assert B % batch_block == 0, "pad batch to a multiple of batch_block"
    n_blocks = B // batch_block

    # token ids rearranged per batch block, row = t*batch_block + b (time-major
    # inside the block) so the kernel's hoisted one-hot matmul needs no reshape.
    ids_blk = (jnp.transpose(x.astype(jnp.int32), (1, 0))          # (T, B)
               .reshape(T, n_blocks, batch_block)
               .transpose(1, 0, 2)
               .reshape(n_blocks, T * batch_block, 1))

    L = jnp.max(lengths)
    last_idx = jnp.reshape(L - 1, (1,)).astype(jnp.int32)
    mask = (lengths == L).astype(jnp.float32).reshape(B, 1)

    inputs = [last_idx, ids_blk, mask, kparams["emb_proj"], kparams["w_hh"][0]]
    for l in range(1, N_LAYERS):
        inputs += [kparams["w_ih"][l], kparams["w_hh"][l], kparams["b"][l]]
    inputs += [kparams["fc_w"], kparams["fc_b"]]

    in_specs = [
        pl.BlockSpec((1, T * batch_block, 1), lambda i, li: (i, 0, 0)),   # ids
        pl.BlockSpec((batch_block, 1), lambda i, li: (i, 0)),             # mask
        pl.BlockSpec((VOCAB_PAD, HIDDEN_DIM), lambda i, li: (0, 0)),      # emb_proj
        pl.BlockSpec((HIDDEN_DIM, HIDDEN_DIM), lambda i, li: (0, 0)),     # W_hh 0
    ]
    for _ in range(1, N_LAYERS):
        in_specs += [
            pl.BlockSpec((HIDDEN_DIM, HIDDEN_DIM), lambda i, li: (0, 0)),  # W_ih l
            pl.BlockSpec((HIDDEN_DIM, HIDDEN_DIM), lambda i, li: (0, 0)),  # W_hh l
            pl.BlockSpec((1, HIDDEN_DIM), lambda i, li: (0, 0)),           # b l
        ]
    in_specs += [
        pl.BlockSpec((HIDDEN_DIM, OUT_PAD), lambda i, li: (0, 0)),         # fc_w
        pl.BlockSpec((1, OUT_PAD), lambda i, li: (0, 0)),                  # fc_b
    ]

    out_spec = pl.BlockSpec((batch_block, OUT_PAD), lambda i, li: (i, 0))

    kernel = make_rnn_kernel(N_LAYERS, T, batch_block, HIDDEN_DIM, VOCAB_PAD)
    out = pl.pallas_call(
        kernel,
        out_shape=jax.ShapeDtypeStruct((B, OUT_PAD), jnp.float32),
        grid_spec=pltpu.PrefetchScalarGridSpec(
            num_scalar_prefetch=1,            # last_idx -> SMEM
            grid=(n_blocks,),                 # batch blocks -> v7x 2nd TC when >=2
            in_specs=in_specs,
            out_specs=out_spec,
        ),
        compiler_params=pltpu.CompilerParams(
            dimension_semantics=("parallel",)),
    )(*inputs)
    return out[:, 0]                          # real logit column; == squeeze(1)


# ---------------------------------------------------------------------------
# Pure-JAX reference of the exact PyTorch (f32) semantics
# ---------------------------------------------------------------------------
def ref_forward(x, lengths, params):
    emb = jnp.take(params["embedding"], x, axis=0).astype(jnp.float32)
    B = emb.shape[0]
    h_seq = emb
    for l in range(N_LAYERS):
        w_ih, w_hh, b = params[f"w_ih_{l}"], params[f"w_hh_{l}"], params[f"b_{l}"]

        def step(h, x_t, _w_ih=w_ih, _w_hh=w_hh, _b=b):
            h_new = jnp.tanh(x_t @ _w_ih + h @ _w_hh + _b)
            return h_new, h_new

        _, outs = jax.lax.scan(step, jnp.zeros((B, HIDDEN_DIM), jnp.float32),
                               jnp.transpose(h_seq, (1, 0, 2)))
        h_seq = jnp.transpose(outs, (1, 0, 2))
    L = jnp.max(lengths)
    last = h_seq[:, L - 1, :] * (lengths == L)[:, None].astype(jnp.float32)
    logits = last @ params["fc_w"] + params["fc_b"]
    return jax.nn.sigmoid(logits)[:, 0]


if __name__ == "__main__":
    key = jax.random.PRNGKey(0)
    k_param, k_x = jax.random.split(key)
    params = init_params(k_param)
    kparams = prepare_kernel_params(params)

    x = jax.random.randint(k_x, (BATCH, SEQ_LEN), 0, VOCAB_SIZE, dtype=jnp.int32)
    lengths = jnp.array([10, 7, 10, 5, 9, 10, 3, 8], dtype=jnp.int32)

    out = jax.block_until_ready(forward(x, lengths, kparams))
    ref = ref_forward(x, lengths, params)

    # Kernel uses bf16 MXU operands (f32 accumulate); tolerance reflects that.
    np.testing.assert_allclose(np.asarray(out), np.asarray(ref),
                               rtol=2e-2, atol=2e-2)
    print("KERNEL_OK")
</pallas_src>

<mosaic_0001>
module attributes {stable_mosaic.version = 11 : i64} {
  func.func @kernel(%arg0: i32, %arg1: memref<1xi32, #tpu.memory_space<smem>>, %arg2: memref<1x80x1xi32, #tpu.memory_space<vmem>>, %arg3: memref<8x1xf32, #tpu.memory_space<vmem>>, %arg4: memref<64x32xbf16, #tpu.memory_space<vmem>>, %arg5: memref<32x32xbf16, #tpu.memory_space<vmem>>, %arg6: memref<32x32xbf16, #tpu.memory_space<vmem>>, %arg7: memref<32x32xbf16, #tpu.memory_space<vmem>>, %arg8: memref<1x32xf32, #tpu.memory_space<vmem>>, %arg9: memref<32x128xbf16, #tpu.memory_space<vmem>>, %arg10: memref<1x128xf32, #tpu.memory_space<vmem>>, %arg11: memref<8x128xf32, #tpu.memory_space<vmem>>) attributes {dimension_semantics = [#tpu.dimension_semantics<parallel>], iteration_bounds = array<i64: 1>, scalar_prefetch = 1 : i64, scratch_operands = 0 : i64, tpu.core_type = #tpu.core_type<tc>, window_params = [{transform_indices = @transform_0, window_bounds = array<i64: 1, 80, 1>}, {transform_indices = @transform_1, window_bounds = array<i64: 8, 1>}, {pipeline_mode = #tpu.pipeline_mode<synchronous>, transform_indices = @transform_2, window_bounds = array<i64: 64, 32>}, {pipeline_mode = #tpu.pipeline_mode<synchronous>, transform_indices = @transform_3, window_bounds = array<i64: 32, 32>}, {pipeline_mode = #tpu.pipeline_mode<synchronous>, transform_indices = @transform_4, window_bounds = array<i64: 32, 32>}, {pipeline_mode = #tpu.pipeline_mode<synchronous>, transform_indices = @transform_5, window_bounds = array<i64: 32, 32>}, {pipeline_mode = #tpu.pipeline_mode<synchronous>, transform_indices = @transform_6, window_bounds = array<i64: 1, 32>}, {pipeline_mode = #tpu.pipeline_mode<synchronous>, transform_indices = @transform_7, window_bounds = array<i64: 32, 128>}, {pipeline_mode = #tpu.pipeline_mode<synchronous>, transform_indices = @transform_8, window_bounds = array<i64: 1, 128>}, {transform_indices = @transform_9, window_bounds = array<i64: 8, 128>}]} {
    %c0 = arith.constant 0 : index
    %0 = memref.load %arg1[%c0] : memref<1xi32, #tpu.memory_space<smem>>
    %c0_0 = arith.constant 0 : index
    %c0_1 = arith.constant 0 : index
    %c0_2 = arith.constant 0 : index
    %1 = vector.load %arg2[%c0_0, %c0_1, %c0_2] : memref<1x80x1xi32, #tpu.memory_space<vmem>>, vector<1x80x1xi32>
    %2 = vector.shape_cast %1 : vector<1x80x1xi32> to vector<80x1xi32>
    %3 = tpu.iota {dimensions = array<i32: 1>} : vector<80x64xi32>
    %4 = vector.broadcast %2 : vector<80x1xi32> to vector<80x64xi32>
    %5 = arith.cmpi eq, %4, %3 : vector<80x64xi32>
    %6 = arith.extui %5 : vector<80x64xi1> to vector<80x64xi32>
    %7 = arith.sitofp %6 : vector<80x64xi32> to vector<80x64xf32>
    %8 = arith.truncf %7 : vector<80x64xf32> to vector<80x64xbf16>
    %c0_3 = arith.constant 0 : index
    %c0_4 = arith.constant 0 : index
    %9 = vector.load %arg4[%c0_3, %c0_4] : memref<64x32xbf16, #tpu.memory_space<vmem>>, vector<64x32xbf16>
    %cst = arith.constant dense<0.000000e+00> : vector<80x32xf32>
    %10 = tpu.matmul %8, %9, %cst {dimension_numbers = #tpu.dot_dimension_numbers<[1], [0], [0], [1], [0, 0, 1, 1], [], []>} : vector<80x64xbf16>, vector<64x32xbf16>, vector<80x32xf32> -> vector<80x32xf32>
    %c0_5 = arith.constant 0 : index
    %c0_6 = arith.constant 0 : index
    %11 = vector.load %arg5[%c0_5, %c0_6] : memref<32x32xbf16, #tpu.memory_space<vmem>>, vector<32x32xbf16>
    %c0_7 = arith.constant 0 : index
    %c0_8 = arith.constant 0 : index
    %12 = vector.load %arg7[%c0_7, %c0_8] : memref<32x32xbf16, #tpu.memory_space<vmem>>, vector<32x32xbf16>
    %c0_9 = arith.constant 0 : index
    %c0_10 = arith.constant 0 : index
    %13 = vector.load %arg6[%c0_9, %c0_10] : memref<32x32xbf16, #tpu.memory_space<vmem>>, vector<32x32xbf16>
    %c0_11 = arith.constant 0 : index
    %c0_12 = arith.constant 0 : index
    %14 = vector.load %arg8[%c0_11, %c0_12] : memref<1x32xf32, #tpu.memory_space<vmem>>, vector<1x32xf32>
    %15 = vector.shape_cast %14 : vector<1x32xf32> to vector<1x32xf32>
    %16 = vector.broadcast %15 : vector<1x32xf32> to vector<8x32xf32>
    %cst_13 = arith.constant 0.000000e+00 : f32
    %17 = vector.broadcast %cst_13 : f32 to vector<8x32xf32>
    %cst_14 = arith.constant 0.000000e+00 : f32
    %18 = vector.broadcast %cst_14 : f32 to vector<8x32xf32>
    %cst_15 = arith.constant 0.000000e+00 : f32
    %19 = vector.broadcast %cst_15 : f32 to vector<8x32xf32>
    %20 = vector.extract_strided_slice %10 {offsets = [0, 0], sizes = [8, 32], strides = [1, 1]} : vector<80x32xf32> to vector<8x32xf32>
    %21 = arith.truncf %17 : vector<8x32xf32> to vector<8x32xbf16>
    %cst_16 = arith.constant dense<0.000000e+00> : vector<8x32xf32>
    %22 = tpu.matmul %21, %11, %cst_16 {dimension_numbers = #tpu.dot_dimension_numbers<[1], [0], [0], [1], [0, 0, 1, 1], [], []>} : vector<8x32xbf16>, vector<32x32xbf16>, vector<8x32xf32> -> vector<8x32xf32>
    %23 = arith.addf %20, %22 : vector<8x32xf32>
    %24 = math.tanh %23 : vector<8x32xf32>
    %25 = arith.truncf %18 : vector<8x32xf32> to vector<8x32xbf16>
    %cst_17 = arith.constant dense<0.000000e+00> : vector<8x32xf32>
    %26 = tpu.matmul %25, %12, %cst_17 {dimension_numbers = #tpu.dot_dimension_numbers<[1], [0], [0], [1], [0, 0, 1, 1], [], []>} : vector<8x32xbf16>, vector<32x32xbf16>, vector<8x32xf32> -> vector<8x32xf32>
    %27 = arith.truncf %24 : vector<8x32xf32> to vector<8x32xbf16>
    %cst_18 = arith.constant dense<0.000000e+00> : vector<8x32xf32>
    %28 = tpu.matmul %27, %13, %cst_18 {dimension_numbers = #tpu.dot_dimension_numbers<[1], [0], [0], [1], [0, 0, 1, 1], [], []>} : vector<8x32xbf16>, vector<32x32xbf16>, vector<8x32xf32> -> vector<8x32xf32>
    %29 = arith.addf %28, %16 : vector<8x32xf32>
    %30 = arith.addf %29, %26 : vector<8x32xf32>
    %31 = math.tanh %30 : vector<8x32xf32>
    %c0_i32 = arith.constant 0 : i32
    %32 = arith.cmpi eq, %c0_i32, %0 : i32
    %33 = arith.select %32, %31, %19 : vector<8x32xf32>
    %34 = vector.extract_strided_slice %10 {offsets = [8, 0], sizes = [8, 32], strides = [1, 1]} : vector<80x32xf32> to vector<8x32xf32>
    %35 = arith.truncf %24 : vector<8x32xf32> to vector<8x32xbf16>
    %cst_19 = arith.constant dense<0.000000e+00> : vector<8x32xf32>
    %36 = tpu.matmul %35, %11, %cst_19 {dimension_numbers = #tpu.dot_dimension_numbers<[1], [0], [0], [1], [0, 0, 1, 1], [], []>} : vector<8x32xbf16>, vector<32x32xbf16>, vector<8x32xf32> -> vector<8x32xf32>
    %37 = arith.addf %34, %36 : vector<8x32xf32>
    %38 = math.tanh %37 : vector<8x32xf32>
    %39 = arith.truncf %31 : vector<8x32xf32> to vector<8x32xbf16>
    %cst_20 = arith.constant dense<0.000000e+00> : vector<8x32xf32>
    %40 = tpu.matmul %39, %12, %cst_20 {dimension_numbers = #tpu.dot_dimension_numbers<[1], [0], [0], [1], [0, 0, 1, 1], [], []>} : vector<8x32xbf16>, vector<32x32xbf16>, vector<8x32xf32> -> vector<8x32xf32>
    %41 = arith.truncf %38 : vector<8x32xf32> to vector<8x32xbf16>
    %cst_21 = arith.constant dense<0.000000e+00> : vector<8x32xf32>
    %42 = tpu.matmul %41, %13, %cst_21 {dimension_numbers = #tpu.dot_dimension_numbers<[1], [0], [0], [1], [0, 0, 1, 1], [], []>} : vector<8x32xbf16>, vector<32x32xbf16>, vector<8x32xf32> -> vector<8x32xf32>
    %43 = arith.addf %42, %16 : vector<8x32xf32>
    %44 = arith.addf %43, %40 : vector<8x32xf32>
    %45 = math.tanh %44 : vector<8x32xf32>
    %c1_i32 = arith.constant 1 : i32
    %46 = arith.cmpi eq, %c1_i32, %0 : i32
    %47 = arith.select %46, %45, %33 : vector<8x32xf32>
    %48 = vector.extract_strided_slice %10 {offsets = [16, 0], sizes = [8, 32], strides = [1, 1]} : vector<80x32xf32> to vector<8x32xf32>
    %49 = arith.truncf %38 : vector<8x32xf32> to vector<8x32xbf16>
    %cst_22 = arith.constant dense<0.000000e+00> : vector<8x32xf32>
    %50 = tpu.matmul %49, %11, %cst_22 {dimension_numbers = #tpu.dot_dimension_numbers<[1], [0], [0], [1], [0, 0, 1, 1], [], []>} : vector<8x32xbf16>, vector<32x32xbf16>, vector<8x32xf32> -> vector<8x32xf32>
    %51 = arith.addf %48, %50 : vector<8x32xf32>
    %52 = math.tanh %51 : vector<8x32xf32>
    %53 = arith.truncf %45 : vector<8x32xf32> to vector<8x32xbf16>
    %cst_23 = arith.constant dense<0.000000e+00> : vector<8x32xf32>
    %54 = tpu.matmul %53, %12, %cst_23 {dimension_numbers = #tpu.dot_dimension_numbers<[1], [0], [0], [1], [0, 0, 1, 1], [], []>} : vector<8x32xbf16>, vector<32x32xbf16>, vector<8x32xf32> -> vector<8x32xf32>
    %55 = arith.truncf %52 : vector<8x32xf32> to vector<8x32xbf16>
    %cst_24 = arith.constant dense<0.000000e+00> : vector<8x32xf32>
    %56 = tpu.matmul %55, %13, %cst_24 {dimension_numbers = #tpu.dot_dimension_numbers<[1], [0], [0], [1], [0, 0, 1, 1], [], []>} : vector<8x32xbf16>, vector<32x32xbf16>, vector<8x32xf32> -> vector<8x32xf32>
    %57 = arith.addf %56, %16 : vector<8x32xf32>
    %58 = arith.addf %57, %54 : vector<8x32xf32>
    %59 = math.tanh %58 : vector<8x32xf32>
    %c2_i32 = arith.constant 2 : i32
    %60 = arith.cmpi eq, %c2_i32, %0 : i32
    %61 = arith.select %60, %59, %47 : vector<8x32xf32>
    %62 = vector.extract_strided_slice %10 {offsets = [24, 0], sizes = [8, 32], strides = [1, 1]} : vector<80x32xf32> to vector<8x32xf32>
    %63 = arith.truncf %52 : vector<8x32xf32> to vector<8x32xbf16>
    %cst_25 = arith.constant dense<0.000000e+00> : vector<8x32xf32>
    %64 = tpu.matmul %63, %11, %cst_25 {dimension_numbers = #tpu.dot_dimension_numbers<[1], [0], [0], [1], [0, 0, 1, 1], [], []>} : vector<8x32xbf16>, vector<32x32xbf16>, vector<8x32xf32> -> vector<8x32xf32>
    %65 = arith.addf %62, %64 : vector<8x32xf32>
    %66 = math.tanh %65 : vector<8x32xf32>
    %67 = arith.truncf %59 : vector<8x32xf32> to vector<8x32xbf16>
    %cst_26 = arith.constant dense<0.000000e+00> : vector<8x32xf32>
    %68 = tpu.matmul %67, %12, %cst_26 {dimension_numbers = #tpu.dot_dimension_numbers<[1], [0], [0], [1], [0, 0, 1, 1], [], []>} : vector<8x32xbf16>, vector<32x32xbf16>, vector<8x32xf32> -> vector<8x32xf32>
    %69 = arith.truncf %66 : vector<8x32xf32> to vector<8x32xbf16>
    %cst_27 = arith.constant dense<0.000000e+00> : vector<8x32xf32>
    %70 = tpu.matmul %69, %13, %cst_27 {dimension_numbers = #tpu.dot_dimension_numbers<[1], [0], [0], [1], [0, 0, 1, 1], [], []>} : vector<8x32xbf16>, vector<32x32xbf16>, vector<8x32xf32> -> vector<8x32xf32>
    %71 = arith.addf %70, %16 : vector<8x32xf32>
    %72 = arith.addf %71, %68 : vector<8x32xf32>
    %73 = math.tanh %72 : vector<8x32xf32>
    %c3_i32 = arith.constant 3 : i32
    %74 = arith.cmpi eq, %c3_i32, %0 : i32
    %75 = arith.select %74, %73, %61 : vector<8x32xf32>
    %76 = vector.extract_strided_slice %10 {offsets = [32, 0], sizes = [8, 32], strides = [1, 1]} : vector<80x32xf32> to vector<8x32xf32>
    %77 = arith.truncf %66 : vector<8x32xf32> to vector<8x32xbf16>
    %cst_28 = arith.constant dense<0.000000e+00> : vector<8x32xf32>
    %78 = tpu.matmul %77, %11, %cst_28 {dimension_numbers = #tpu.dot_dimension_numbers<[1], [0], [0], [1], [0, 0, 1, 1], [], []>} : vector<8x32xbf16>, vector<32x32xbf16>, vector<8x32xf32> -> vector<8x32xf32>
    %79 = arith.addf %76, %78 : vector<8x32xf32>
    %80 = math.tanh %79 : vector<8x32xf32>
    %81 = arith.truncf %73 : vector<8x32xf32> to vector<8x32xbf16>
    %cst_29 = arith.constant dense<0.000000e+00> : vector<8x32xf32>
    %82 = tpu.matmul %81, %12, %cst_29 {dimension_numbers = #tpu.dot_dimension_numbers<[1], [0], [0], [1], [0, 0, 1, 1], [], []>} : vector<8x32xbf16>, vector<32x32xbf16>, vector<8x32xf32> -> vector<8x32xf32>
    %83 = arith.truncf %80 : vector<8x32xf32> to vector<8x32xbf16>
    %cst_30 = arith.constant dense<0.000000e+00> : vector<8x32xf32>
    %84 = tpu.matmul %83, %13, %cst_30 {dimension_numbers = #tpu.dot_dimension_numbers<[1], [0], [0], [1], [0, 0, 1, 1], [], []>} : vector<8x32xbf16>, vector<32x32xbf16>, vector<8x32xf32> -> vector<8x32xf32>
    %85 = arith.addf %84, %16 : vector<8x32xf32>
    %86 = arith.addf %85, %82 : vector<8x32xf32>
    %87 = math.tanh %86 : vector<8x32xf32>
    %c4_i32 = arith.constant 4 : i32
    %88 = arith.cmpi eq, %c4_i32, %0 : i32
    %89 = arith.select %88, %87, %75 : vector<8x32xf32>
    %90 = vector.extract_strided_slice %10 {offsets = [40, 0], sizes = [8, 32], strides = [1, 1]} : vector<80x32xf32> to vector<8x32xf32>
    %91 = arith.truncf %80 : vector<8x32xf32> to vector<8x32xbf16>
    %cst_31 = arith.constant dense<0.000000e+00> : vector<8x32xf32>
    %92 = tpu.matmul %91, %11, %cst_31 {dimension_numbers = #tpu.dot_dimension_numbers<[1], [0], [0], [1], [0, 0, 1, 1], [], []>} : vector<8x32xbf16>, vector<32x32xbf16>, vector<8x32xf32> -> vector<8x32xf32>
    %93 = arith.addf %90, %92 : vector<8x32xf32>
    %94 = math.tanh %93 : vector<8x32xf32>
    %95 = arith.truncf %87 : vector<8x32xf32> to vector<8x32xbf16>
    %cst_32 = arith.constant dense<0.000000e+00> : vector<8x32xf32>
    %96 = tpu.matmul %95, %12, %cst_32 {dimension_numbers = #tpu.dot_dimension_numbers<[1], [0], [0], [1], [0, 0, 1, 1], [], []>} : vector<8x32xbf16>, vector<32x32xbf16>, vector<8x32xf32> -> vector<8x32xf32>
    %97 = arith.truncf %94 : vector<8x32xf32> to vector<8x32xbf16>
    %cst_33 = arith.constant dense<0.000000e+00> : vector<8x32xf32>
    %98 = tpu.matmul %97, %13, %cst_33 {dimension_numbers = #tpu.dot_dimension_numbers<[1], [0], [0], [1], [0, 0, 1, 1], [], []>} : vector<8x32xbf16>, vector<32x32xbf16>, vector<8x32xf32> -> vector<8x32xf32>
    %99 = arith.addf %98, %16 : vector<8x32xf32>
    %100 = arith.addf %99, %96 : vector<8x32xf32>
    %101 = math.tanh %100 : vector<8x32xf32>
    %c5_i32 = arith.constant 5 : i32
    %102 = arith.cmpi eq, %c5_i32, %0 : i32
    %103 = arith.select %102, %101, %89 : vector<8x32xf32>
    %104 = vector.extract_strided_slice %10 {offsets = [48, 0], sizes = [8, 32], strides = [1, 1]} : vector<80x32xf32> to vector<8x32xf32>
    %105 = arith.truncf %94 : vector<8x32xf32> to vector<8x32xbf16>
    %cst_34 = arith.constant dense<0.000000e+00> : vector<8x32xf32>
    %106 = tpu.matmul %105, %11, %cst_34 {dimension_numbers = #tpu.dot_dimension_numbers<[1], [0], [0], [1], [0, 0, 1, 1], [], []>} : vector<8x32xbf16>, vector<32x32xbf16>, vector<8x32xf32> -> vector<8x32xf32>
    %107 = arith.addf %104, %106 : vector<8x32xf32>
    %108 = math.tanh %107 : vector<8x32xf32>
    %109 = arith.truncf %101 : vector<8x32xf32> to vector<8x32xbf16>
    %cst_35 = arith.constant dense<0.000000e+00> : vector<8x32xf32>
    %110 = tpu.matmul %109, %12, %cst_35 {dimension_numbers = #tpu.dot_dimension_numbers<[1], [0], [0], [1], [0, 0, 1, 1], [], []>} : vector<8x32xbf16>, vector<32x32xbf16>, vector<8x32xf32> -> vector<8x32xf32>
    %111 = arith.truncf %108 : vector<8x32xf32> to vector<8x32xbf16>
    %cst_36 = arith.constant dense<0.000000e+00> : vector<8x32xf32>
    %112 = tpu.matmul %111, %13, %cst_36 {dimension_numbers = #tpu.dot_dimension_numbers<[1], [0], [0], [1], [0, 0, 1, 1], [], []>} : vector<8x32xbf16>, vector<32x32xbf16>, vector<8x32xf32> -> vector<8x32xf32>
    %113 = arith.addf %112, %16 : vector<8x32xf32>
    %114 = arith.addf %113, %110 : vector<8x32xf32>
    %115 = math.tanh %114 : vector<8x32xf32>
    %c6_i32 = arith.constant 6 : i32
    %116 = arith.cmpi eq, %c6_i32, %0 : i32
    %117 = arith.select %116, %115, %103 : vector<8x32xf32>
    %118 = vector.extract_strided_slice %10 {offsets = [56, 0], sizes = [8, 32], strides = [1, 1]} : vector<80x32xf32> to vector<8x32xf32>
    %119 = arith.truncf %108 : vector<8x32xf32> to vector<8x32xbf16>
    %cst_37 = arith.constant dense<0.000000e+00> : vector<8x32xf32>
    %120 = tpu.matmul %119, %11, %cst_37 {dimension_numbers = #tpu.dot_dimension_numbers<[1], [0], [0], [1], [0, 0, 1, 1], [], []>} : vector<8x32xbf16>, vector<32x32xbf16>, vector<8x32xf32> -> vector<8x32xf32>
    %121 = arith.addf %118, %120 : vector<8x32xf32>
    %122 = math.tanh %121 : vector<8x32xf32>
    %123 = arith.truncf %115 : vector<8x32xf32> to vector<8x32xbf16>
    %cst_38 = arith.constant dense<0.000000e+00> : vector<8x32xf32>
    %124 = tpu.matmul %123, %12, %cst_38 {dimension_numbers = #tpu.dot_dimension_numbers<[1], [0], [0], [1], [0, 0, 1, 1], [], []>} : vector<8x32xbf16>, vector<32x32xbf16>, vector<8x32xf32> -> vector<8x32xf32>
    %125 = arith.truncf %122 : vector<8x32xf32> to vector<8x32xbf16>
    %cst_39 = arith.constant dense<0.000000e+00> : vector<8x32xf32>
    %126 = tpu.matmul %125, %13, %cst_39 {dimension_numbers = #tpu.dot_dimension_numbers<[1], [0], [0], [1], [0, 0, 1, 1], [], []>} : vector<8x32xbf16>, vector<32x32xbf16>, vector<8x32xf32> -> vector<8x32xf32>
    %127 = arith.addf %126, %16 : vector<8x32xf32>
    %128 = arith.addf %127, %124 : vector<8x32xf32>
    %129 = math.tanh %128 : vector<8x32xf32>
    %c7_i32 = arith.constant 7 : i32
    %130 = arith.cmpi eq, %c7_i32, %0 : i32
    %131 = arith.select %130, %129, %117 : vector<8x32xf32>
    %132 = vector.extract_strided_slice %10 {offsets = [64, 0], sizes = [8, 32], strides = [1, 1]} : vector<80x32xf32> to vector<8x32xf32>
    %133 = arith.truncf %122 : vector<8x32xf32> to vector<8x32xbf16>
    %cst_40 = arith.constant dense<0.000000e+00> : vector<8x32xf32>
    %134 = tpu.matmul %133, %11, %cst_40 {dimension_numbers = #tpu.dot_dimension_numbers<[1], [0], [0], [1], [0, 0, 1, 1], [], []>} : vector<8x32xbf16>, vector<32x32xbf16>, vector<8x32xf32> -> vector<8x32xf32>
    %135 = arith.addf %132, %134 : vector<8x32xf32>
    %136 = math.tanh %135 : vector<8x32xf32>
    %137 = arith.truncf %129 : vector<8x32xf32> to vector<8x32xbf16>
    %cst_41 = arith.constant dense<0.000000e+00> : vector<8x32xf32>
    %138 = tpu.matmul %137, %12, %cst_41 {dimension_numbers = #tpu.dot_dimension_numbers<[1], [0], [0], [1], [0, 0, 1, 1], [], []>} : vector<8x32xbf16>, vector<32x32xbf16>, vector<8x32xf32> -> vector<8x32xf32>
    %139 = arith.truncf %136 : vector<8x32xf32> to vector<8x32xbf16>
    %cst_42 = arith.constant dense<0.000000e+00> : vector<8x32xf32>
    %140 = tpu.matmul %139, %13, %cst_42 {dimension_numbers = #tpu.dot_dimension_numbers<[1], [0], [0], [1], [0, 0, 1, 1], [], []>} : vector<8x32xbf16>, vector<32x32xbf16>, vector<8x32xf32> -> vector<8x32xf32>
    %141 = arith.addf %140, %16 : vector<8x32xf32>
    %142 = arith.addf %141, %138 : vector<8x32xf32>
    %143 = math.tanh %142 : vector<8x32xf32>
    %c8_i32 = arith.constant 8 : i32
    %144 = arith.cmpi eq, %c8_i32, %0 : i32
    %145 = arith.select %144, %143, %131 : vector<8x32xf32>
    %146 = vector.extract_strided_slice %10 {offsets = [72, 0], sizes = [8, 32], strides = [1, 1]} : vector<80x32xf32> to vector<8x32xf32>
    %147 = arith.truncf %136 : vector<8x32xf32> to vector<8x32xbf16>
    %cst_43 = arith.constant dense<0.000000e+00> : vector<8x32xf32>
    %148 = tpu.matmul %147, %11, %cst_43 {dimension_numbers = #tpu.dot_dimension_numbers<[1], [0], [0], [1], [0, 0, 1, 1], [], []>} : vector<8x32xbf16>, vector<32x32xbf16>, vector<8x32xf32> -> vector<8x32xf32>
    %149 = arith.addf %146, %148 : vector<8x32xf32>
    %150 = math.tanh %149 : vector<8x32xf32>
    %151 = arith.truncf %143 : vector<8x32xf32> to vector<8x32xbf16>
    %cst_44 = arith.constant dense<0.000000e+00> : vector<8x32xf32>
    %152 = tpu.matmul %151, %12, %cst_44 {dimension_numbers = #tpu.dot_dimension_numbers<[1], [0], [0], [1], [0, 0, 1, 1], [], []>} : vector<8x32xbf16>, vector<32x32xbf16>, vector<8x32xf32> -> vector<8x32xf32>
    %153 = arith.truncf %150 : vector<8x32xf32> to vector<8x32xbf16>
    %cst_45 = arith.constant dense<0.000000e+00> : vector<8x32xf32>
    %154 = tpu.matmul %153, %13, %cst_45 {dimension_numbers = #tpu.dot_dimension_numbers<[1], [0], [0], [1], [0, 0, 1, 1], [], []>} : vector<8x32xbf16>, vector<32x32xbf16>, vector<8x32xf32> -> vector<8x32xf32>
    %155 = arith.addf %154, %16 : vector<8x32xf32>
    %156 = arith.addf %155, %152 : vector<8x32xf32>
    %157 = math.tanh %156 : vector<8x32xf32>
    %c9_i32 = arith.constant 9 : i32
    %158 = arith.cmpi eq, %c9_i32, %0 : i32
    %159 = arith.select %158, %157, %145 : vector<8x32xf32>
    %c0_46 = arith.constant 0 : index
    %c0_47 = arith.constant 0 : index
    %160 = vector.load %arg3[%c0_46, %c0_47] : memref<8x1xf32, #tpu.memory_space<vmem>>, vector<8x1xf32>
    %161 = vector.broadcast %160 : vector<8x1xf32> to vector<8x32xf32>
    %162 = arith.mulf %159, %161 : vector<8x32xf32>
    %163 = arith.truncf %162 : vector<8x32xf32> to vector<8x32xbf16>
    %c0_48 = arith.constant 0 : index
    %c0_49 = arith.constant 0 : index
    %164 = vector.load %arg9[%c0_48, %c0_49] : memref<32x128xbf16, #tpu.memory_space<vmem>>, vector<32x128xbf16>
    %cst_50 = arith.constant dense<0.000000e+00> : vector<8x128xf32>
    %165 = tpu.matmul %163, %164, %cst_50 {dimension_numbers = #tpu.dot_dimension_numbers<[1], [0], [0], [1], [0, 0, 1, 1], [], []>} : vector<8x32xbf16>, vector<32x128xbf16>, vector<8x128xf32> -> vector<8x128xf32>
    %c0_51 = arith.constant 0 : index
    %c0_52 = arith.constant 0 : index
    %166 = vector.load %arg10[%c0_51, %c0_52] : memref<1x128xf32, #tpu.memory_space<vmem>>, vector<1x128xf32>
    %167 = vector.broadcast %166 : vector<1x128xf32> to vector<8x128xf32>
    %168 = arith.addf %165, %167 : vector<8x128xf32>
    %169 = arith.negf %168 : vector<8x128xf32>
    %170 = math.exp %169 : vector<8x128xf32>
    %cst_53 = arith.constant 1.000000e+00 : f32
    %171 = vector.broadcast %cst_53 : f32 to vector<8x128xf32>
    %172 = arith.addf %171, %170 : vector<8x128xf32>
    %173 = arith.divf %171, %172 : vector<8x128xf32>
    %c0_54 = arith.constant 0 : index
    %c0_55 = arith.constant 0 : index
    %174 = vector.load %arg11[%c0_54, %c0_55] : memref<8x128xf32, #tpu.memory_space<vmem>>, vector<8x128xf32>
    tpu.vector_store %arg11[%c0_54, %c0_55], %173 {strides = array<i32>} : memref<8x128xf32, #tpu.memory_space<vmem>>, vector<8x128xf32>,
    return
  }
  func.func @transform_0(%arg0: i32, %arg1: memref<1xi32, #tpu.memory_space<smem>>) -> (i32, i32, i32) {
    %c0_i32 = arith.constant 0 : i32
    %c0_i32_0 = arith.constant 0 : i32
    %c0_i32_1 = arith.constant 0 : i32
    return %arg0, %c0_i32, %c0_i32_0 : i32, i32, i32
  }
  func.func @transform_1(%arg0: i32, %arg1: memref<1xi32, #tpu.memory_space<smem>>) -> (i32, i32) {
    %c0_i32 = arith.constant 0 : i32
    %c0_i32_0 = arith.constant 0 : i32
    return %arg0, %c0_i32 : i32, i32
  }
  func.func @transform_2(%arg0: i32, %arg1: memref<1xi32, #tpu.memory_space<smem>>) -> (i32, i32) {
    %c0_i32 = arith.constant 0 : i32
    %c0_i32_0 = arith.constant 0 : i32
    %c0_i32_1 = arith.constant 0 : i32
    return %c0_i32, %c0_i32_0 : i32, i32
  }
  func.func @transform_3(%arg0: i32, %arg1: memref<1xi32, #tpu.memory_space<smem>>) -> (i32, i32) {
    %c0_i32 = arith.constant 0 : i32
    %c0_i32_0 = arith.constant 0 : i32
    %c0_i32_1 = arith.constant 0 : i32
    return %c0_i32, %c0_i32_0 : i32, i32
  }
  func.func @transform_4(%arg0: i32, %arg1: memref<1xi32, #tpu.memory_space<smem>>) -> (i32, i32) {
    %c0_i32 = arith.constant 0 : i32
    %c0_i32_0 = arith.constant 0 : i32
    %c0_i32_1 = arith.constant 0 : i32
    return %c0_i32, %c0_i32_0 : i32, i32
  }
  func.func @transform_5(%arg0: i32, %arg1: memref<1xi32, #tpu.memory_space<smem>>) -> (i32, i32) {
    %c0_i32 = arith.constant 0 : i32
    %c0_i32_0 = arith.constant 0 : i32
    %c0_i32_1 = arith.constant 0 : i32
    return %c0_i32, %c0_i32_0 : i32, i32
  }
  func.func @transform_6(%arg0: i32, %arg1: memref<1xi32, #tpu.memory_space<smem>>) -> (i32, i32) {
    %c0_i32 = arith.constant 0 : i32
    %c0_i32_0 = arith.constant 0 : i32
    %c0_i32_1 = arith.constant 0 : i32
    return %c0_i32, %c0_i32_0 : i32, i32
  }
  func.func @transform_7(%arg0: i32, %arg1: memref<1xi32, #tpu.memory_space<smem>>) -> (i32, i32) {
    %c0_i32 = arith.constant 0 : i32
    %c0_i32_0 = arith.constant 0 : i32
    %c0_i32_1 = arith.constant 0 : i32
    return %c0_i32, %c0_i32_0 : i32, i32
  }
  func.func @transform_8(%arg0: i32, %arg1: memref<1xi32, #tpu.memory_space<smem>>) -> (i32, i32) {
    %c0_i32 = arith.constant 0 : i32
    %c0_i32_0 = arith.constant 0 : i32
    %c0_i32_1 = arith.constant 0 : i32
    return %c0_i32, %c0_i32_0 : i32, i32
  }
  func.func @transform_9(%arg0: i32, %arg1: memref<1xi32, #tpu.memory_space<smem>>) -> (i32, i32) {
    %c0_i32 = arith.constant 0 : i32
    %c0_i32_0 = arith.constant 0 : i32
    return %arg0, %c0_i32 : i32, i32
  }
}

</mosaic_0001>

<llo_original>
// kernel: tpu_custom_call.1
$region0: #{tpu_custom_call.1}
  #allocation0 [shape = 'u32[]', space=smem, size = 0x4, offset = 0x4, fixed_abs, tag = 'smem constant byte address 0x4 - core index']
  #allocation1 [shape = 'u32[72,128]{1,0:T(1,128)}', space=vmem, size = 0x9000, scoped, tag = 'internal scratch']
  #allocation2 [shape = 's32[1]{0}', space=sflag, size = 0x4, scoped, tag = 'scoped memory for tpu_custom_call.1']
  #allocation3 [shape = 's32[1]{0:T(128)S(6)}', space=smem, size = 0x200, scoped, tag = 'prefetched SMEM operand 0']
  %s0 = inlined_call_operand.<no memory space> [shape: s32[1], index: 0, kind: input, shape index: {}]
  %s1 = inlined_call_operand.vmem [shape: s32[1,80,1], index: 1, kind: input, shape index: {}]
  %s2 = inlined_call_operand.vmem [shape: f32[8,1], index: 2, kind: input, shape index: {}]
  %s3 = inlined_call_operand.vmem [shape: bf16[64,32], index: 3, kind: input, shape index: {}]
  %s4 = inlined_call_operand.vmem [shape: bf16[32,32], index: 4, kind: input, shape index: {}]
  %s5 = inlined_call_operand.vmem [shape: bf16[32,32], index: 5, kind: input, shape index: {}]
  %s6 = inlined_call_operand.vmem [shape: bf16[32,32], index: 6, kind: input, shape index: {}]
  %s7 = inlined_call_operand.vmem [shape: f32[1,32], index: 7, kind: input, shape index: {}]
  %s8 = inlined_call_operand.vmem [shape: bf16[32,128], index: 8, kind: input, shape index: {}]
  %s9 = inlined_call_operand.vmem [shape: f32[1,128], index: 9, kind: input, shape index: {}]
  %s10 = inlined_call_operand.hbm [shape: f32[8,128], index: 10, kind: output, shape index: {}]
  %s11 = sld [smem:[#allocation0]]
  $region46: #{tpu_custom_call.1} parent=0
    _
  %s13 = ssub.s32 1, %s11
  %s14 = scalar_select 0, %s13, %s11
  %15 = sst [smem:[#allocation3]] %s0
  $region1: #{tpu_custom_call.1} parent=0
    #allocation4 [shape = 'u8[4096]{0}', space=vmem, size = 0x1000, scoped, tag = 'output window, operand 0, single buffered']
    #allocation5 [shape = 's32[1]{0}', space=sflag, size = 0x4, scoped, tag = 'scoped memory for tpu_custom_call.1']
    %16 = vsyncpa [#allocation5], 0
    // Predicated region
    $region2: #{tpu_custom_call.1} parent=1 // pred_check
      _
    $region3: #{tpu_custom_call.1} parent=1 // pred_check_branch
      %18 = sbr.rel (0) target = $region5
    $region4: #{tpu_custom_call.1} parent=1 // pred_region
      _
    $region5: #{tpu_custom_call.1} parent=1 // pred_fallthru
      _
    // Predicated region
    $region6: #{tpu_custom_call.1} parent=1 // pred_check
      _
    $region7: #{tpu_custom_call.1} parent=1 // pred_check_branch
      %20 = sbr.rel (0) target = $region9
    $region8: #{tpu_custom_call.1} parent=1 // pred_region
      _
    $region9: #{tpu_custom_call.1} parent=1 // pred_fallthru
      _
    // Predicated region
    $region10: #{tpu_custom_call.1} parent=1 // pred_check
      _
    $region11: #{tpu_custom_call.1} parent=1 // pred_check_branch
      %22 = sbr.rel (0) target = $region13
    $region12: #{tpu_custom_call.1} parent=1 // pred_region
      _
    $region13: #{tpu_custom_call.1} parent=1 // pred_fallthru
      _
    // Predicated region
    $region14: #{tpu_custom_call.1} parent=1 // pred_check
      _
    $region15: #{tpu_custom_call.1} parent=1 // pred_check_branch
      %24 = sbr.rel (0) target = $region17
    $region16: #{tpu_custom_call.1} parent=1 // pred_region
      _
    $region17: #{tpu_custom_call.1} parent=1 // pred_fallthru
      _
    // Predicated region
    $region18: #{tpu_custom_call.1} parent=1 // pred_check
      _
    $region19: #{tpu_custom_call.1} parent=1 // pred_check_branch
      %26 = sbr.rel (0) target = $region21
    $region20: #{tpu_custom_call.1} parent=1 // pred_region
      _
    $region21: #{tpu_custom_call.1} parent=1 // pred_fallthru
      _
    // Predicated region
    $region22: #{tpu_custom_call.1} parent=1 // pred_check
      _
    $region23: #{tpu_custom_call.1} parent=1 // pred_check_branch
      %28 = sbr.rel (0) target = $region25
    $region24: #{tpu_custom_call.1} parent=1 // pred_region
      _
    $region25: #{tpu_custom_call.1} parent=1 // pred_fallthru
      _
    // Predicated region
    $region26: #{tpu_custom_call.1} parent=1 // pred_check
      _
    $region27: #{tpu_custom_call.1} parent=1 // pred_check_branch
      %30 = sbr.rel (0) target = $region29
    $region28: #{tpu_custom_call.1} parent=1 // pred_region
      _
    $region29: #{tpu_custom_call.1} parent=1 // pred_fallthru
      _
    // Predicated region
    $region30: #{tpu_custom_call.1} parent=1 // pred_check
      _
    $region31: #{tpu_custom_call.1} parent=1 // pred_check_branch
      %32 = sbr.rel (0) target = $region33
    $region32: #{tpu_custom_call.1} parent=1 // pred_region
      _
    $region33: #{tpu_custom_call.1} parent=1 // pred_fallthru
      _
    // Predicated region
    $region34: #{tpu_custom_call.1} parent=1 // pred_check
      _
    $region35: #{tpu_custom_call.1} parent=1 // pred_check_branch
      %34 = sbr.rel (0) target = $region37
    $region36: #{tpu_custom_call.1} parent=1 // pred_region
      _
    $region37: #{tpu_custom_call.1} parent=1 // pred_fallthru
      _
    %s36 = sld [smem:[#allocation3]]
    %v37 = vld [vmem:[%s1] sm:$0xff]
    %v38 = vld [vmem:[%s1 + $0x8] sm:$0xff]
    %v39 = vld [vmem:[%s1 + $0x10] sm:$0xff]
    %v40 = vld [vmem:[%s1 + $0x18] sm:$0xff]
    %v41 = vld [vmem:[%s1 + $0x20] sm:$0xff]
    %v42 = vld [vmem:[%s1 + $0x28] sm:$0xff]
    %v43 = vld [vmem:[%s1 + $0x30] sm:$0xff]
    %v44 = vld [vmem:[%s1 + $0x38] sm:$0xff]
    %v45 = vld [vmem:[%s1 + $0x40] sm:$0xff]
    %v46 = vld [vmem:[%s1 + $0x48] sm:$0xff]
    %v47 = vlaneseq
    %v48 = vand.u32 %v47, 127
    %49 = vset.pattern.permute.xlu0 0
    %50 = vperm.xlu0 %49, %v37
    %v51 = vpop.permute.xlu0 %50
    %52 = vset.pattern.permute.xlu0 0
    %53 = vperm.xlu0 %52, %v38
    %v54 = vpop.permute.xlu0 %53
    %55 = vset.pattern.permute.xlu0 0
    %56 = vperm.xlu0 %55, %v39
    %v57 = vpop.permute.xlu0 %56
    %58 = vset.pattern.permute.xlu0 0
    %59 = vperm.xlu0 %58, %v40
    %v60 = vpop.permute.xlu0 %59
    %61 = vset.pattern.permute.xlu0 0
    %62 = vperm.xlu0 %61, %v41
    %v63 = vpop.permute.xlu0 %62
    %64 = vset.pattern.permute.xlu0 0
    %65 = vperm.xlu0 %64, %v42
    %v66 = vpop.permute.xlu0 %65
    %67 = vset.pattern.permute.xlu0 0
    %68 = vperm.xlu0 %67, %v43
    %v69 = vpop.permute.xlu0 %68
    %70 = vset.pattern.permute.xlu0 0
    %71 = vperm.xlu0 %70, %v44
    %v72 = vpop.permute.xlu0 %71
    %73 = vset.pattern.permute.xlu0 0
    %74 = vperm.xlu0 %73, %v45
    %v75 = vpop.permute.xlu0 %74
    %76 = vset.pattern.permute.xlu0 0
    %77 = vperm.xlu0 %76, %v46
    %v78 = vpop.permute.xlu0 %77
    %vm79 = vcmp.eq.s32.totalorder %v51, %v48
    %vm80 = vcmp.eq.s32.totalorder %v54, %v48
    %vm81 = vcmp.eq.s32.totalorder %v57, %v48
    %vm82 = vcmp.eq.s32.totalorder %v60, %v48
    %vm83 = vcmp.eq.s32.totalorder %v63, %v48
    %vm84 = vcmp.eq.s32.totalorder %v66, %v48
    %vm85 = vcmp.eq.s32.totalorder %v69, %v48
    %vm86 = vcmp.eq.s32.totalorder %v72, %v48
    %vm87 = vcmp.eq.s32.totalorder %v75, %v48
    %vm88 = vcmp.eq.s32.totalorder %v78, %v48
    %v89 = vsel %vm79, 1, 0
    %v90 = vsel %vm80, 1, 0
    %v91 = vsel %vm81, 1, 0
    %v92 = vsel %vm82, 1, 0
    %v93 = vsel %vm83, 1, 0
    %v94 = vsel %vm84, 1, 0
    %v95 = vsel %vm85, 1, 0
    %v96 = vsel %vm86, 1, 0
    %v97 = vsel %vm87, 1, 0
    %v98 = vsel %vm88, 1, 0
    %v99 = vcvt.s32.f32 %v89
    %v100 = vcvt.s32.f32 %v90
    %v101 = vcvt.s32.f32 %v91
    %v102 = vcvt.s32.f32 %v92
    %v103 = vcvt.s32.f32 %v93
    %v104 = vcvt.s32.f32 %v94
    %v105 = vcvt.s32.f32 %v95
    %v106 = vcvt.s32.f32 %v96
    %v107 = vcvt.s32.f32 %v97
    %v108 = vcvt.s32.f32 %v98
    %v109 = vpack.c.bf16 %v100, %v99
    %v110 = vpack.c.bf16 %v102, %v101
    %v111 = vpack.c.bf16 %v104, %v103
    %v112 = vpack.c.bf16 %v106, %v105
    %v113 = vpack.c.bf16 %v108, %v107
    %v114 = vld [vmem:[%s3] sm:$0xf]
    %v115 = vld [vmem:[%s3 + $0x4] sm:$0xf]
    %v116 = vld [vmem:[%s3 + $0x8] sm:$0xf]
    %v117 = vld [vmem:[%s3 + $0xc] sm:$0xf]
    %v118 = vld [vmem:[%s3 + $0x10] sm:$0xf]
    %v119 = vld [vmem:[%s3 + $0x14] sm:$0xf]
    %v120 = vld [vmem:[%s3 + $0x18] sm:$0xf]
    %v121 = vld [vmem:[%s3 + $0x1c] sm:$0xf]
    %v130 = vunpack.c.l.b16 %v114
    %v131 = vunpack.c.l.b16 %v115
    %v132 = vunpack.c.l.b16 %v116
    %v133 = vunpack.c.l.b16 %v117
    %v134 = vunpack.c.l.b16 %v118
    %v135 = vunpack.c.l.b16 %v119
    %v136 = vunpack.c.l.b16 %v120
    %v137 = vunpack.c.l.b16 %v121
    %v138 = vpack.c.b16 %v131, %v130
    %v139 = vpack.c.b16 %v133, %v132
    %v140 = vpack.c.b16 %v135, %v134
    %v141 = vpack.c.b16 %v137, %v136
    %vm146 = vcmask 523264
    %v148 = vsel %vm146, %v109, 0
    %v151 = vsel %vm146, %v110, 0
    %v154 = vsel %vm146, %v111, 0
    %v157 = vsel %vm146, %v112, 0
    %v160 = vsel %vm146, %v113, 0
    %162 = vmatpush.bf16.msra.mxu0 0
    %163 = vmatpush.bf16.msra.mxu0 0
    %164 = vmatpush.bf16.msra.mxu0 0
    %165 = vmatpush.bf16.msra.mxu0 0
    %166 = vmatpush.bf16.msra.mxu0 %v141
    %167 = vmatpush.bf16.msra.mxu0 %v140
    %168 = vmatpush.bf16.msra.mxu0 %v139
    %169 = vmatpush.bf16.msra.mxu0 %v138
    %170 = vmatmul.bf16.gmra.mxu0 %v148
    %v171 = vpop.f32.mrf.mxu0
    %v172 = vadd.f32 0.0, %v171
    %v173 = vpop.f32.mrf.mxu0
    %v174 = vadd.f32 0.0, %v173
    %175 = vmatmul.bf16.gmra.mxu0 %v151
    %v176 = vpop.f32.mrf.mxu0
    %v177 = vadd.f32 0.0, %v176
    %v178 = vpop.f32.mrf.mxu0
    %v179 = vadd.f32 0.0, %v178
    %180 = vmatmul.bf16.gmra.mxu0 %v154
    %v181 = vpop.f32.mrf.mxu0
    %v182 = vadd.f32 0.0, %v181
    %v183 = vpop.f32.mrf.mxu0
    %v184 = vadd.f32 0.0, %v183
    %185 = vmatmul.bf16.gmra.mxu0 %v157
    %v186 = vpop.f32.mrf.mxu0
    %v187 = vadd.f32 0.0, %v186
    %v188 = vpop.f32.mrf.mxu0
    %v189 = vadd.f32 0.0, %v188
    %190 = vmatmul.bf16.gmra.mxu0 %v160
    %v191 = vpop.f32.mrf.mxu0
    %v192 = vadd.f32 0.0, %v191
    %v193 = vpop.f32.mrf.mxu0
    %v194 = vadd.f32 0.0, %v193
    %195 = vdwg.mxu0
    %v196 = vld [vmem:[%s4] sm:$0xf]
    %v197 = vld [vmem:[%s4 + $0x4] sm:$0xf]
    %v198 = vld [vmem:[%s4 + $0x8] sm:$0xf]
    %v199 = vld [vmem:[%s4 + $0xc] sm:$0xf]
    %v200 = vld [vmem:[%s6] sm:$0xf]
    %v201 = vld [vmem:[%s6 + $0x4] sm:$0xf]
    %v202 = vld [vmem:[%s6 + $0x8] sm:$0xf]
    %v203 = vld [vmem:[%s6 + $0xc] sm:$0xf]
    %v204 = vld [vmem:[%s5] sm:$0xf]
    %v205 = vld [vmem:[%s5 + $0x4] sm:$0xf]
    %v206 = vld [vmem:[%s5 + $0x8] sm:$0xf]
    %v207 = vld [vmem:[%s5 + $0xc] sm:$0xf]
    %v208 = vld [vmem:[%s7] sm:$0x1]
    %v210 = vperm.slane %v208, 0
    %v216 = vunpack.c.l.b16 %v196
    %v217 = vunpack.c.l.b16 %v197
    %v218 = vunpack.c.l.b16 %v198
    %v219 = vunpack.c.l.b16 %v199
    %v220 = vpack.c.b16 %v217, %v216
    %v221 = vpack.c.b16 %v219, %v218
    %vm224 = vcmask 261120
    %v226 = vsel %vm224, 0, 0
    %228 = vmatpush.bf16.msra.mxu0 0
    %229 = vmatpush.bf16.msra.mxu0 0
    %230 = vmatpush.bf16.msra.mxu0 0
    %231 = vmatpush.bf16.msra.mxu0 0
    %232 = vmatpush.bf16.msra.mxu0 0
    %233 = vmatpush.bf16.msra.mxu0 0
    %234 = vmatpush.bf16.msra.mxu0 %v221
    %235 = vmatpush.bf16.msra.mxu0 %v220
    %236 = vmatmul.bf16.gmra.mxu0 %v226
    %v237 = vpop.f32.mrf.mxu0
    %v238 = vadd.f32 0.0, %v237
    %v239 = vpop.f32.mrf.mxu0
    %240 = vdwg.mxu0
    %v241 = vadd.f32 %v172, %v238
    %v242 = vtanh.pop %v241
    %v247 = vunpack.c.l.b16 %v200
    %v248 = vunpack.c.l.b16 %v201
    %v249 = vunpack.c.l.b16 %v202
    %v250 = vunpack.c.l.b16 %v203
    %v251 = vpack.c.b16 %v248, %v247
    %v252 = vpack.c.b16 %v250, %v249
    %255 = vmatpush.bf16.msra.mxu0 0
    %256 = vmatpush.bf16.msra.mxu0 0
    %257 = vmatpush.bf16.msra.mxu0 0
    %258 = vmatpush.bf16.msra.mxu0 0
    %259 = vmatpush.bf16.msra.mxu0 0
    %260 = vmatpush.bf16.msra.mxu0 0
    %261 = vmatpush.bf16.msra.mxu0 %v252
    %262 = vmatpush.bf16.msra.mxu0 %v251
    %263 = vmatmul.bf16.gmra.mxu0 %v226
    %v264 = vpop.f32.mrf.mxu0
    %v265 = vadd.f32 0.0, %v264
    %v266 = vpop.f32.mrf.mxu0
    %267 = vdwg.mxu0
    %v268 = vpack.c.bf16 %v242, %v242
    %v273 = vunpack.c.l.b16 %v204
    %v274 = vunpack.c.l.b16 %v205
    %v275 = vunpack.c.l.b16 %v206
    %v276 = vunpack.c.l.b16 %v207
    %v277 = vpack.c.b16 %v274, %v273
    %v278 = vpack.c.b16 %v276, %v275
    %v282 = vsel %vm224, %v268, 0
    %284 = vmatpush.bf16.msra.mxu0 0
    %285 = vmatpush.bf16.msra.mxu0 0
    %286 = vmatpush.bf16.msra.mxu0 0
    %287 = vmatpush.bf16.msra.mxu0 0
    %288 = vmatpush.bf16.msra.mxu0 0
    %289 = vmatpush.bf16.msra.mxu0 0
    %290 = vmatpush.bf16.msra.mxu0 %v278
    %291 = vmatpush.bf16.msra.mxu0 %v277
    %292 = vmatmul.bf16.gmra.mxu0 %v282
    %v293 = vpop.f32.mrf.mxu0
    %v294 = vadd.f32 %v210, %v293
    %v295 = vpop.f32.mrf.mxu0
    %296 = vdwg.mxu0
    %v297 = vadd.f32 %v294, %v265
    %v298 = vtanh.pop %v297
    %p299 = scmp.eq.s32.totalorder %s36, 0
    %s300 = scalar_select %p299, 1, 0
    %v301 = vstv %s300
    %vm302 = vcmp.eq.s32.totalorder %v301, 1
    %v303 = vsel %vm302, %v298, 0.0
    %304 = vmatpush.bf16.msra.mxu0 0
    %305 = vmatpush.bf16.msra.mxu0 0
    %306 = vmatpush.bf16.msra.mxu0 0
    %307 = vmatpush.bf16.msra.mxu0 0
    %308 = vmatpush.bf16.msra.mxu0 0
    %309 = vmatpush.bf16.msra.mxu0 0
    %310 = vmatpush.bf16.msra.mxu0 %v221
    %311 = vmatpush.bf16.msra.mxu0 %v220
    %312 = vmatmul.bf16.gmra.mxu0 %v282
    %v313 = vpop.f32.mrf.mxu0
    %v314 = vadd.f32 0.0, %v313
    %v315 = vpop.f32.mrf.mxu0
    %316 = vdwg.mxu0
    %v317 = vadd.f32 %v174, %v314
    %v318 = vtanh.pop %v317
    %v319 = vpack.c.bf16 %v298, %v298
    %v321 = vsel %vm224, %v319, 0
    %323 = vmatpush.bf16.msra.mxu0 0
    %324 = vmatpush.bf16.msra.mxu0 0
    %325 = vmatpush.bf16.msra.mxu0 0
    %326 = vmatpush.bf16.msra.mxu0 0
    %327 = vmatpush.bf16.msra.mxu0 0
    %328 = vmatpush.bf16.msra.mxu0 0
    %329 = vmatpush.bf16.msra.mxu0 %v252
    %330 = vmatpush.bf16.msra.mxu0 %v251
    %331 = vmatmul.bf16.gmra.mxu0 %v321
    %v332 = vpop.f32.mrf.mxu0
    %v333 = vadd.f32 0.0, %v332
    %v334 = vpop.f32.mrf.mxu0
    %335 = vdwg.mxu0
    %v336 = vpack.c.bf16 %v318, %v318
    %v338 = vsel %vm224, %v336, 0
    %340 = vmatpush.bf16.msra.mxu0 0
    %341 = vmatpush.bf16.msra.mxu0 0
    %342 = vmatpush.bf16.msra.mxu0 0
    %343 = vmatpush.bf16.msra.mxu0 0
    %344 = vmatpush.bf16.msra.mxu0 0
    %345 = vmatpush.bf16.msra.mxu0 0
    %346 = vmatpush.bf16.msra.mxu0 %v278
    %347 = vmatpush.bf16.msra.mxu0 %v277
    %348 = vmatmul.bf16.gmra.mxu0 %v338
    %v349 = vpop.f32.mrf.mxu0
    %v350 = vadd.f32 %v210, %v349
    %v351 = vpop.f32.mrf.mxu0
    %352 = vdwg.mxu0
    %v353 = vadd.f32 %v350, %v333
    %v354 = vtanh.pop %v353
    %p355 = scmp.eq.s32.totalorder %s36, 1
    %s356 = scalar_select %p355, 1, 0
    %v357 = vstv %s356
    %vm358 = vcmp.eq.s32.totalorder %v357, 1
    %v359 = vsel %vm358, %v354, %v303
    %360 = vmatpush.bf16.msra.mxu0 0
    %361 = vmatpush.bf16.msra.mxu0 0
    %362 = vmatpush.bf16.msra.mxu0 0
    %363 = vmatpush.bf16.msra.mxu0 0
    %364 = vmatpush.bf16.msra.mxu0 0
    %365 = vmatpush.bf16.msra.mxu0 0
    %366 = vmatpush.bf16.msra.mxu0 %v221
    %367 = vmatpush.bf16.msra.mxu0 %v220
    %368 = vmatmul.bf16.gmra.mxu0 %v338
    %v369 = vpop.f32.mrf.mxu0
    %v370 = vadd.f32 0.0, %v369
    %v371 = vpop.f32.mrf.mxu0
    %372 = vdwg.mxu0
    %v373 = vadd.f32 %v177, %v370
    %v374 = vtanh.pop %v373
    %v375 = vpack.c.bf16 %v354, %v354
    %v377 = vsel %vm224, %v375, 0
    %379 = vmatpush.bf16.msra.mxu0 0
    %380 = vmatpush.bf16.msra.mxu0 0
    %381 = vmatpush.bf16.msra.mxu0 0
    %382 = vmatpush.bf16.msra.mxu0 0
    %383 = vmatpush.bf16.msra.mxu0 0
    %384 = vmatpush.bf16.msra.mxu0 0
    %385 = vmatpush.bf16.msra.mxu0 %v252
    %386 = vmatpush.bf16.msra.mxu0 %v251
    %387 = vmatmul.bf16.gmra.mxu0 %v377
    %v388 = vpop.f32.mrf.mxu0
    %v389 = vadd.f32 0.0, %v388
    %v390 = vpop.f32.mrf.mxu0
    %391 = vdwg.mxu0
    %v392 = vpack.c.bf16 %v374, %v374
    %v394 = vsel %vm224, %v392, 0
    %396 = vmatpush.bf16.msra.mxu0 0
    %397 = vmatpush.bf16.msra.mxu0 0
    %398 = vmatpush.bf16.msra.mxu0 0
    %399 = vmatpush.bf16.msra.mxu0 0
    %400 = vmatpush.bf16.msra.mxu0 0
    %401 = vmatpush.bf16.msra.mxu0 0
    %402 = vmatpush.bf16.msra.mxu0 %v278
    %403 = vmatpush.bf16.msra.mxu0 %v277
    %404 = vmatmul.bf16.gmra.mxu0 %v394
    %v405 = vpop.f32.mrf.mxu0
    %v406 = vadd.f32 %v210, %v405
    %v407 = vpop.f32.mrf.mxu0
    %408 = vdwg.mxu0
    %v409 = vadd.f32 %v406, %v389
    %v410 = vtanh.pop %v409
    %p411 = scmp.eq.s32.totalorder %s36, 2
    %s412 = scalar_select %p411, 1, 0
    %v413 = vstv %s412
    %vm414 = vcmp.eq.s32.totalorder %v413, 1
    %v415 = vsel %vm414, %v410, %v359
    %416 = vmatpush.bf16.msra.mxu0 0
    %417 = vmatpush.bf16.msra.mxu0 0
    %418 = vmatpush.bf16.msra.mxu0 0
    %419 = vmatpush.bf16.msra.mxu0 0
    %420 = vmatpush.bf16.msra.mxu0 0
    %421 = vmatpush.bf16.msra.mxu0 0
    %422 = vmatpush.bf16.msra.mxu0 %v221
    %423 = vmatpush.bf16.msra.mxu0 %v220
    %424 = vmatmul.bf16.gmra.mxu0 %v394
    %v425 = vpop.f32.mrf.mxu0
    %v426 = vadd.f32 0.0, %v425
    %v427 = vpop.f32.mrf.mxu0
    %428 = vdwg.mxu0
    %v429 = vadd.f32 %v179, %v426
    %v430 = vtanh.pop %v429
    %v431 = vpack.c.bf16 %v410, %v410
    %v433 = vsel %vm224, %v431, 0
    %435 = vmatpush.bf16.msra.mxu0 0
    %436 = vmatpush.bf16.msra.mxu0 0
    %437 = vmatpush.bf16.msra.mxu0 0
    %438 = vmatpush.bf16.msra.mxu0 0
    %439 = vmatpush.bf16.msra.mxu0 0
    %440 = vmatpush.bf16.msra.mxu0 0
    %441 = vmatpush.bf16.msra.mxu0 %v252
    %442 = vmatpush.bf16.msra.mxu0 %v251
    %443 = vmatmul.bf16.gmra.mxu0 %v433
    %v444 = vpop.f32.mrf.mxu0
    %v445 = vadd.f32 0.0, %v444
    %v446 = vpop.f32.mrf.mxu0
    %447 = vdwg.mxu0
    %v448 = vpack.c.bf16 %v430, %v430
    %v450 = vsel %vm224, %v448, 0
    %452 = vmatpush.bf16.msra.mxu0 0
    %453 = vmatpush.bf16.msra.mxu0 0
    %454 = vmatpush.bf16.msra.mxu0 0
    %455 = vmatpush.bf16.msra.mxu0 0
    %456 = vmatpush.bf16.msra.mxu0 0
    %457 = vmatpush.bf16.msra.mxu0 0
    %458 = vmatpush.bf16.msra.mxu0 %v278
    %459 = vmatpush.bf16.msra.mxu0 %v277
    %460 = vmatmul.bf16.gmra.mxu0 %v450
    %v461 = vpop.f32.mrf.mxu0
    %v462 = vadd.f32 %v210, %v461
    %v463 = vpop.f32.mrf.mxu0
    %464 = vdwg.mxu0
    %v465 = vadd.f32 %v462, %v445
    %v466 = vtanh.pop %v465
    %p467 = scmp.eq.s32.totalorder %s36, 3
    %s468 = scalar_select %p467, 1, 0
    %v469 = vstv %s468
    %vm470 = vcmp.eq.s32.totalorder %v469, 1
    %v471 = vsel %vm470, %v466, %v415
    %472 = vmatpush.bf16.msra.mxu0 0
    %473 = vmatpush.bf16.msra.mxu0 0
    %474 = vmatpush.bf16.msra.mxu0 0
    %475 = vmatpush.bf16.msra.mxu0 0
    %476 = vmatpush.bf16.msra.mxu0 0
    %477 = vmatpush.bf16.msra.mxu0 0
    %478 = vmatpush.bf16.msra.mxu0 %v221
    %479 = vmatpush.bf16.msra.mxu0 %v220
    %480 = vmatmul.bf16.gmra.mxu0 %v450
    %v481 = vpop.f32.mrf.mxu0
    %v482 = vadd.f32 0.0, %v481
    %v483 = vpop.f32.mrf.mxu0
    %484 = vdwg.mxu0
    %v485 = vadd.f32 %v182, %v482
    %v486 = vtanh.pop %v485
    %v487 = vpack.c.bf16 %v466, %v466
    %v489 = vsel %vm224, %v487, 0
    %491 = vmatpush.bf16.msra.mxu0 0
    %492 = vmatpush.bf16.msra.mxu0 0
    %493 = vmatpush.bf16.msra.mxu0 0
    %494 = vmatpush.bf16.msra.mxu0 0
    %495 = vmatpush.bf16.msra.mxu0 0
    %496 = vmatpush.bf16.msra.mxu0 0
    %497 = vmatpush.bf16.msra.mxu0 %v252
    %498 = vmatpush.bf16.msra.mxu0 %v251
    %499 = vmatmul.bf16.gmra.mxu0 %v489
    %v500 = vpop.f32.mrf.mxu0
    %v501 = vadd.f32 0.0, %v500
    %v502 = vpop.f32.mrf.mxu0
    %503 = vdwg.mxu0
    %v504 = vpack.c.bf16 %v486, %v486
    %v506 = vsel %vm224, %v504, 0
    %508 = vmatpush.bf16.msra.mxu0 0
    %509 = vmatpush.bf16.msra.mxu0 0
    %510 = vmatpush.bf16.msra.mxu0 0
    %511 = vmatpush.bf16.msra.mxu0 0
    %512 = vmatpush.bf16.msra.mxu0 0
    %513 = vmatpush.bf16.msra.mxu0 0
    %514 = vmatpush.bf16.msra.mxu0 %v278
    %515 = vmatpush.bf16.msra.mxu0 %v277
    %516 = vmatmul.bf16.gmra.mxu0 %v506
    %v517 = vpop.f32.mrf.mxu0
    %v518 = vadd.f32 %v210, %v517
    %v519 = vpop.f32.mrf.mxu0
    %520 = vdwg.mxu0
    %v521 = vadd.f32 %v518, %v501
    %v522 = vtanh.pop %v521
    %p523 = scmp.eq.s32.totalorder %s36, 4
    %s524 = scalar_select %p523, 1, 0
    %v525 = vstv %s524
    %vm526 = vcmp.eq.s32.totalorder %v525, 1
    %v527 = vsel %vm526, %v522, %v471
    %528 = vmatpush.bf16.msra.mxu0 0
    %529 = vmatpush.bf16.msra.mxu0 0
    %530 = vmatpush.bf16.msra.mxu0 0
    %531 = vmatpush.bf16.msra.mxu0 0
    %532 = vmatpush.bf16.msra.mxu0 0
    %533 = vmatpush.bf16.msra.mxu0 0
    %534 = vmatpush.bf16.msra.mxu0 %v221
    %535 = vmatpush.bf16.msra.mxu0 %v220
    %536 = vmatmul.bf16.gmra.mxu0 %v506
    %v537 = vpop.f32.mrf.mxu0
    %v538 = vadd.f32 0.0, %v537
    %v539 = vpop.f32.mrf.mxu0
    %540 = vdwg.mxu0
    %v541 = vadd.f32 %v184, %v538
    %v542 = vtanh.pop %v541
    %v543 = vpack.c.bf16 %v522, %v522
    %v545 = vsel %vm224, %v543, 0
    %547 = vmatpush.bf16.msra.mxu0 0
    %548 = vmatpush.bf16.msra.mxu0 0
    %549 = vmatpush.bf16.msra.mxu0 0
    %550 = vmatpush.bf16.msra.mxu0 0
    %551 = vmatpush.bf16.msra.mxu0 0
    %552 = vmatpush.bf16.msra.mxu0 0
    %553 = vmatpush.bf16.msra.mxu0 %v252
    %554 = vmatpush.bf16.msra.mxu0 %v251
    %555 = vmatmul.bf16.gmra.mxu0 %v545
    %v556 = vpop.f32.mrf.mxu0
    %v557 = vadd.f32 0.0, %v556
    %v558 = vpop.f32.mrf.mxu0
    %559 = vdwg.mxu0
    %v560 = vpack.c.bf16 %v542, %v542
    %v562 = vsel %vm224, %v560, 0
    %564 = vmatpush.bf16.msra.mxu0 0
    %565 = vmatpush.bf16.msra.mxu0 0
    %566 = vmatpush.bf16.msra.mxu0 0
    %567 = vmatpush.bf16.msra.mxu0 0
    %568 = vmatpush.bf16.msra.mxu0 0
    %569 = vmatpush.bf16.msra.mxu0 0
    %570 = vmatpush.bf16.msra.mxu0 %v278
    %571 = vmatpush.bf16.msra.mxu0 %v277
    %572 = vmatmul.bf16.gmra.mxu0 %v562
    %v573 = vpop.f32.mrf.mxu0
    %v574 = vadd.f32 %v210, %v573
    %v575 = vpop.f32.mrf.mxu0
    %576 = vdwg.mxu0
    %v577 = vadd.f32 %v574, %v557
    %v578 = vtanh.pop %v577
    %p579 = scmp.eq.s32.totalorder %s36, 5
    %s580 = scalar_select %p579, 1, 0
    %v581 = vstv %s580
    %vm582 = vcmp.eq.s32.totalorder %v581, 1
    %v583 = vsel %vm582, %v578, %v527
    %584 = vmatpush.bf16.msra.mxu0 0
    %585 = vmatpush.bf16.msra.mxu0 0
    %586 = vmatpush.bf16.msra.mxu0 0
    %587 = vmatpush.bf16.msra.mxu0 0
    %588 = vmatpush.bf16.msra.mxu0 0
    %589 = vmatpush.bf16.msra.mxu0 0
    %590 = vmatpush.bf16.msra.mxu0 %v221
    %591 = vmatpush.bf16.msra.mxu0 %v220
    %592 = vmatmul.bf16.gmra.mxu0 %v562
    %v593 = vpop.f32.mrf.mxu0
    %v594 = vadd.f32 0.0, %v593
    %v595 = vpop.f32.mrf.mxu0
    %596 = vdwg.mxu0
    %v597 = vadd.f32 %v187, %v594
    %v598 = vtanh.pop %v597
    %v599 = vpack.c.bf16 %v578, %v578
    %v601 = vsel %vm224, %v599, 0
    %603 = vmatpush.bf16.msra.mxu0 0
    %604 = vmatpush.bf16.msra.mxu0 0
    %605 = vmatpush.bf16.msra.mxu0 0
    %606 = vmatpush.bf16.msra.mxu0 0
    %607 = vmatpush.bf16.msra.mxu0 0
    %608 = vmatpush.bf16.msra.mxu0 0
    %609 = vmatpush.bf16.msra.mxu0 %v252
    %610 = vmatpush.bf16.msra.mxu0 %v251
    %611 = vmatmul.bf16.gmra.mxu0 %v601
    %v612 = vpop.f32.mrf.mxu0
    %v613 = vadd.f32 0.0, %v612
    %v614 = vpop.f32.mrf.mxu0
    %615 = vdwg.mxu0
    %v616 = vpack.c.bf16 %v598, %v598
    %v618 = vsel %vm224, %v616, 0
    %620 = vmatpush.bf16.msra.mxu0 0
    %621 = vmatpush.bf16.msra.mxu0 0
    %622 = vmatpush.bf16.msra.mxu0 0
    %623 = vmatpush.bf16.msra.mxu0 0
    %624 = vmatpush.bf16.msra.mxu0 0
    %625 = vmatpush.bf16.msra.mxu0 0
    %626 = vmatpush.bf16.msra.mxu0 %v278
    %627 = vmatpush.bf16.msra.mxu0 %v277
    %628 = vmatmul.bf16.gmra.mxu0 %v618
    %v629 = vpop.f32.mrf.mxu0
    %v630 = vadd.f32 %v210, %v629
    %v631 = vpop.f32.mrf.mxu0
    %632 = vdwg.mxu0
    %v633 = vadd.f32 %v630, %v613
    %v634 = vtanh.pop %v633
    %p635 = scmp.eq.s32.totalorder %s36, 6
    %s636 = scalar_select %p635, 1, 0
    %v637 = vstv %s636
    %vm638 = vcmp.eq.s32.totalorder %v637, 1
    %v639 = vsel %vm638, %v634, %v583
    %640 = vmatpush.bf16.msra.mxu0 0
    %641 = vmatpush.bf16.msra.mxu0 0
    %642 = vmatpush.bf16.msra.mxu0 0
    %643 = vmatpush.bf16.msra.mxu0 0
    %644 = vmatpush.bf16.msra.mxu0 0
    %645 = vmatpush.bf16.msra.mxu0 0
    %646 = vmatpush.bf16.msra.mxu0 %v221
    %647 = vmatpush.bf16.msra.mxu0 %v220
    %648 = vmatmul.bf16.gmra.mxu0 %v618
    %v649 = vpop.f32.mrf.mxu0
    %v650 = vadd.f32 0.0, %v649
    %v651 = vpop.f32.mrf.mxu0
    %652 = vdwg.mxu0
    %v653 = vadd.f32 %v189, %v650
    %v654 = vtanh.pop %v653
    %v655 = vpack.c.bf16 %v634, %v634
    %v657 = vsel %vm224, %v655, 0
    %659 = vmatpush.bf16.msra.mxu0 0
    %660 = vmatpush.bf16.msra.mxu0 0
    %661 = vmatpush.bf16.msra.mxu0 0
    %662 = vmatpush.bf16.msra.mxu0 0
    %663 = vmatpush.bf16.msra.mxu0 0
    %664 = vmatpush.bf16.msra.mxu0 0
    %665 = vmatpush.bf16.msra.mxu0 %v252
    %666 = vmatpush.bf16.msra.mxu0 %v251
    %667 = vmatmul.bf16.gmra.mxu0 %v657
    %v668 = vpop.f32.mrf.mxu0
    %v669 = vadd.f32 0.0, %v668
    %v670 = vpop.f32.mrf.mxu0
    %671 = vdwg.mxu0
    %v672 = vpack.c.bf16 %v654, %v654
    %v674 = vsel %vm224, %v672, 0
    %676 = vmatpush.bf16.msra.mxu0 0
    %677 = vmatpush.bf16.msra.mxu0 0
    %678 = vmatpush.bf16.msra.mxu0 0
    %679 = vmatpush.bf16.msra.mxu0 0
    %680 = vmatpush.bf16.msra.mxu0 0
    %681 = vmatpush.bf16.msra.mxu0 0
    %682 = vmatpush.bf16.msra.mxu0 %v278
    %683 = vmatpush.bf16.msra.mxu0 %v277
    %684 = vmatmul.bf16.gmra.mxu0 %v674
    %v685 = vpop.f32.mrf.mxu0
    %v686 = vadd.f32 %v210, %v685
    %v687 = vpop.f32.mrf.mxu0
    %688 = vdwg.mxu0
    %v689 = vadd.f32 %v686, %v669
    %v690 = vtanh.pop %v689
    %p691 = scmp.eq.s32.totalorder %s36, 7
    %s692 = scalar_select %p691, 1, 0
    %v693 = vstv %s692
    %vm694 = vcmp.eq.s32.totalorder %v693, 1
    %v695 = vsel %vm694, %v690, %v639
    %696 = vmatpush.bf16.msra.mxu0 0
    %697 = vmatpush.bf16.msra.mxu0 0
    %698 = vmatpush.bf16.msra.mxu0 0
    %699 = vmatpush.bf16.msra.mxu0 0
    %700 = vmatpush.bf16.msra.mxu0 0
    %701 = vmatpush.bf16.msra.mxu0 0
    %702 = vmatpush.bf16.msra.mxu0 %v221
    %703 = vmatpush.bf16.msra.mxu0 %v220
    %704 = vmatmul.bf16.gmra.mxu0 %v674
    %v705 = vpop.f32.mrf.mxu0
    %v706 = vadd.f32 0.0, %v705
    %v707 = vpop.f32.mrf.mxu0
    %708 = vdwg.mxu0
    %v709 = vadd.f32 %v192, %v706
    %v710 = vtanh.pop %v709
    %v711 = vpack.c.bf16 %v690, %v690
    %v713 = vsel %vm224, %v711, 0
    %715 = vmatpush.bf16.msra.mxu0 0
    %716 = vmatpush.bf16.msra.mxu0 0
    %717 = vmatpush.bf16.msra.mxu0 0
    %718 = vmatpush.bf16.msra.mxu0 0
    %719 = vmatpush.bf16.msra.mxu0 0
    %720 = vmatpush.bf16.msra.mxu0 0
    %721 = vmatpush.bf16.msra.mxu0 %v252
    %722 = vmatpush.bf16.msra.mxu0 %v251
    %723 = vmatmul.bf16.gmra.mxu0 %v713
    %v724 = vpop.f32.mrf.mxu0
    %v725 = vadd.f32 0.0, %v724
    %v726 = vpop.f32.mrf.mxu0
    %727 = vdwg.mxu0
    %v728 = vpack.c.bf16 %v710, %v710
    %v730 = vsel %vm224, %v728, 0
    %732 = vmatpush.bf16.msra.mxu0 0
    %733 = vmatpush.bf16.msra.mxu0 0
    %734 = vmatpush.bf16.msra.mxu0 0
    %735 = vmatpush.bf16.msra.mxu0 0
    %736 = vmatpush.bf16.msra.mxu0 0
    %737 = vmatpush.bf16.msra.mxu0 0
    %738 = vmatpush.bf16.msra.mxu0 %v278
    %739 = vmatpush.bf16.msra.mxu0 %v277
    %740 = vmatmul.bf16.gmra.mxu0 %v730
    %v741 = vpop.f32.mrf.mxu0
    %v742 = vadd.f32 %v210, %v741
    %v743 = vpop.f32.mrf.mxu0
    %744 = vdwg.mxu0
    %v745 = vadd.f32 %v742, %v725
    %v746 = vtanh.pop %v745
    %p747 = scmp.eq.s32.totalorder %s36, 8
    %s748 = scalar_select %p747, 1, 0
    %v749 = vstv %s748
    %vm750 = vcmp.eq.s32.totalorder %v749, 1
    %v751 = vsel %vm750, %v746, %v695
    %752 = vmatpush.bf16.msra.mxu0 0
    %753 = vmatpush.bf16.msra.mxu0 0
    %754 = vmatpush.bf16.msra.mxu0 0
    %755 = vmatpush.bf16.msra.mxu0 0
    %756 = vmatpush.bf16.msra.mxu0 0
    %757 = vmatpush.bf16.msra.mxu0 0
    %758 = vmatpush.bf16.msra.mxu0 %v221
    %759 = vmatpush.bf16.msra.mxu0 %v220
    %760 = vmatmul.bf16.gmra.mxu0 %v730
    %v761 = vpop.f32.mrf.mxu0
    %v762 = vadd.f32 0.0, %v761
    %v763 = vpop.f32.mrf.mxu0
    %764 = vdwg.mxu0
    %v765 = vadd.f32 %v194, %v762
    %v766 = vtanh.pop %v765
    %v767 = vpack.c.bf16 %v746, %v746
    %v769 = vsel %vm224, %v767, 0
    %771 = vmatpush.bf16.msra.mxu0 0
    %772 = vmatpush.bf16.msra.mxu0 0
    %773 = vmatpush.bf16.msra.mxu0 0
    %774 = vmatpush.bf16.msra.mxu0 0
    %775 = vmatpush.bf16.msra.mxu0 0
    %776 = vmatpush.bf16.msra.mxu0 0
    %777 = vmatpush.bf16.msra.mxu0 %v252
    %778 = vmatpush.bf16.msra.mxu0 %v251
    %779 = vmatmul.bf16.gmra.mxu0 %v769
    %v780 = vpop.f32.mrf.mxu0
    %v781 = vadd.f32 0.0, %v780
    %v782 = vpop.f32.mrf.mxu0
    %783 = vdwg.mxu0
    %v784 = vpack.c.bf16 %v766, %v766
    %v786 = vsel %vm224, %v784, 0
    %788 = vmatpush.bf16.msra.mxu0 0
    %789 = vmatpush.bf16.msra.mxu0 0
    %790 = vmatpush.bf16.msra.mxu0 0
    %791 = vmatpush.bf16.msra.mxu0 0
    %792 = vmatpush.bf16.msra.mxu0 0
    %793 = vmatpush.bf16.msra.mxu0 0
    %794 = vmatpush.bf16.msra.mxu0 %v278
    %795 = vmatpush.bf16.msra.mxu0 %v277
    %796 = vmatmul.bf16.gmra.mxu0 %v786
    %v797 = vpop.f32.mrf.mxu0
    %v798 = vadd.f32 %v210, %v797
    %v799 = vpop.f32.mrf.mxu0
    %800 = vdwg.mxu0
    %v801 = vadd.f32 %v798, %v781
    %v802 = vtanh.pop %v801
    %p803 = scmp.eq.s32.totalorder %s36, 9
    %s804 = scalar_select %p803, 1, 0
    %v805 = vstv %s804
    %vm806 = vcmp.eq.s32.totalorder %v805, 1
    %v807 = vsel %vm806, %v802, %v751
    %v808 = vld [vmem:[%s2] sm:$0xff]
    %810 = vset.pattern.permute.xlu0 0
    %811 = vperm.xlu0 %810, %v808
    %v812 = vpop.permute.xlu0 %811
    %v814 = vmul.f32 %v807, %v812
    %v815 = vpack.c.bf16 %v814, %v814
    %v816 = vld [vmem:[%s8] sm:$0xf]
    %v817 = vld [vmem:[%s8 + $0x4] sm:$0xf]
    %v818 = vld [vmem:[%s8 + $0x8] sm:$0xf]
    %v819 = vld [vmem:[%s8 + $0xc] sm:$0xf]
    %v820 = vld [vmem:[%s9] sm:$0x1]
    %v822 = vperm.slane %v820, 0
    %v828 = vunpack.c.l.b16 %v816
    %v829 = vunpack.c.l.b16 %v817
    %v830 = vunpack.c.l.b16 %v818
    %v831 = vunpack.c.l.b16 %v819
    %v832 = vpack.c.b16 %v829, %v828
    %v833 = vpack.c.b16 %v831, %v830
    %v837 = vsel %vm224, %v815, 0
    %839 = vmatpush.bf16.msra.mxu0 0
    %840 = vmatpush.bf16.msra.mxu0 0
    %841 = vmatpush.bf16.msra.mxu0 0
    %842 = vmatpush.bf16.msra.mxu0 0
    %843 = vmatpush.bf16.msra.mxu0 0
    %844 = vmatpush.bf16.msra.mxu0 0
    %845 = vmatpush.bf16.msra.mxu0 %v833
    %846 = vmatpush.bf16.msra.mxu0 %v832
    %847 = vmatmul.bf16.gmra.mxu0 %v837
    %v848 = vpop.f32.mrf.mxu0
    %v849 = vadd.f32 %v822, %v848
    %v850 = vpop.f32.mrf.mxu0
    %851 = vdwg.mxu0
    %v852 = vxor.u32 %v849, 2147483648
    %v853 = vmul.f32 %v852, 1.442695
    %v854 = vpow.pop %v853
    %v855 = vadd.f32 %v854, 1.0
    %v856 = vrcp.pop %v855
    %v857 = vmul.f32 %v855, %v856
    %v858 = vsub.f32 1.0, %v857
    %v859 = vmul.f32 %v856, %v858
    %v860 = vadd.f32 %v856, %v859
    %vm861 = vweird.f32 %v855
    %vm862 = vweird.f32 %v856
    %vm863 = vmor %vm861, %vm862
    %v864 = vsel %vm863, %v856, %v860
    %v865 = vand.u32 2147483647, %v855
    %vm866 = vcmp.eq.f32.partialorder %v865, 8.507059e+37
    %v867 = vand.u32 %v855, 2147483648
    %v868 = vor.u32 1.1754944e-38, %v867
    %v869 = vsel %vm866, %v868, %v864
    %v870 = vmul.f32 1.0, %v869
    %871 = vst [vmem:[#allocation4] sm:$0xff] %v870
    // Predicated region
    $region38: #{tpu_custom_call.1} parent=1 // pred_check
      _
    $region39: #{tpu_custom_call.1} parent=1 // pred_check_branch
      %873 = sbr.rel (0) target = $region41
    $region40: #{tpu_custom_call.1} parent=1 // pred_region
      %875 = vsyncadd [#allocation5], 0
      %s877 = sshll.u32 [#allocation4], 4
      %s878 = int_to_ptr.vmem [resolvable:$true] %s877
      %s879 = sshll.u32 %s10, 4
      %s880 = int_to_ptr.hbm [resolvable:$true] %s879
      %882 = dma.vmem_to_hbm [thread:$0]  %s878, 128, %s880, [#allocation5]
    $region41: #{tpu_custom_call.1} parent=1 // pred_fallthru
      _
    // Predicated region
    $region42: #{tpu_custom_call.1} parent=1 // pred_check
      _
    $region43: #{tpu_custom_call.1} parent=1 // pred_check_branch
      %884 = sbr.rel (0) target = $region45
    $region44: #{tpu_custom_call.1} parent=1 // pred_region
      %886 = dma.done [#allocation5], 128
    $region45: #{tpu_custom_call.1} parent=1 // pred_fallthru
      _
    %887 = vsyncpa [#allocation5], 1

</llo_original>
